<compile_context>
chip_gen: v7x
topology: tpu7x:2x2x1
jax: 0.10.0
libtpu: 0.0.40
codegen_flags: <defaults>
</compile_context>

<pallas_src>
import math

import jax
import jax.numpy as jnp
import numpy as np
from jax import lax
from jax.experimental import pallas as pl
from jax.experimental.pallas import tpu as pltpu

_EPS = 1e-6
_LANE = 128
_SUB = 8


def _cdiv(a, b):
    return -(-a // b)


def _round_up(a, b):
    return _cdiv(a, b) * b


def _default_vmem_limit_bytes():
    """~80% of the chip's VMEM (v5e/v6e: ~102 MiB, v7x: ~51 MiB)."""
    cap = 64 * 1024 * 1024  # conservative default (v7x per-TensorCore VMEM)
    try:
        cap = int(pltpu.get_tpu_info().vmem_capacity_bytes)
    except Exception:
        pass
    return max(16 * 1024 * 1024, (cap * 4) // 5)


def _guess_num_tensorcores():
    """Best-effort TensorCore count; defaults to 1 (no behavior change)."""
    try:
        info = pltpu.get_tpu_info()
        for name in ("num_cores", "core_count", "num_tensorcores"):
            v = getattr(info, name, None)
            if v:
                return max(1, int(v))
    except Exception:
        pass
    try:
        return max(1, int(getattr(jax.devices()[0], "num_cores", 1) or 1))
    except Exception:
        return 1


def _choose_cols(n, trailing):
    """Pick a lane layout reachable by a FREE reshape (no HBM copy)."""
    if n % _LANE == 0:
        return _LANE                      # lane-dense (rows, 128)
    if trailing is not None and 1 < trailing < n and n % trailing == 0:
        return int(trailing)              # natural trailing dim (e.g. W)
    # Last resort: largest divisor of n not exceeding 2048.
    best, d = 1, 1
    while d * d <= n:
        if n % d == 0:
            for c in (d, n // d):
                if c <= 2048:
                    best = max(best, c)
        d += 1
    return best if best > 1 else n


def _pick_tiles(rows, max_rows, min_tiles=1):
    """Balanced row-tiling: tile_rows multiple of 8, waste < 8 rows/tile."""
    if rows <= _SUB:
        return rows, 1
    nt = max(min_tiles, _cdiv(rows, max_rows))
    nt = min(nt, _cdiv(rows, _SUB))
    tr = _round_up(_cdiv(rows, nt), _SUB)
    return tr, _cdiv(rows, tr)


def _mask_fill(dtype, for_min):
    if jnp.issubdtype(dtype, jnp.floating):
        return jnp.array(jnp.inf if for_min else -jnp.inf, dtype)
    info = jnp.iinfo(dtype)
    return jnp.array(info.max if for_min else info.min, dtype)


# ---------------------------------------------------------------------------
# Kernel A: fully fused per-sample min/max + normalize (sample fits in VMEM).
# ---------------------------------------------------------------------------
def _make_fused_kernel():
    def kernel(x_ref, o_ref):
        x = x_ref[0]                                        # (rows, cols) native
        # Sublane-first reduction (pairwise VPU min/max across vregs) ...
        mn = jnp.min(x, axis=0, keepdims=True)
        mx = jnp.max(x, axis=0, keepdims=True)
        # ... then a single cross-lane XLU reduce.  min/max are exact in the
        # native dtype; scalars are promoted to f32 for the normalize math.
        mn = jnp.min(mn, axis=1, keepdims=True).astype(jnp.float32)
        mx = jnp.max(mx, axis=1, keepdims=True).astype(jnp.float32)
        scale = 1.0 / (mx - mn + _EPS)                      # one exact scalar divide
        o_ref[0] = ((x.astype(jnp.float32) - mn) * scale).astype(o_ref.dtype)
    return kernel


# ---------------------------------------------------------------------------
# Kernel B1: per-tile partial min/max (fully parallel, tiny outputs).
# ---------------------------------------------------------------------------
def _make_partial_minmax_kernel(rows, tile_rows, cols, in_dtype):
    ragged = (rows % tile_rows) != 0

    def kernel(x_ref, mn_ref, mx_ref):
        x = x_ref[0]                                        # (tile_rows, cols)
        if ragged:
            # Mask rows past the end of the sample (last tile only).
            t = pl.program_id(1)
            ridx = lax.broadcasted_iota(jnp.int32, (tile_rows, cols), 0)
            valid = (t * tile_rows + ridx) < rows
            x_mn = jnp.where(valid, x, _mask_fill(in_dtype, True))
            x_mx = jnp.where(valid, x, _mask_fill(in_dtype, False))
        else:
            x_mn = x_mx = x
        pmn = jnp.min(x_mn, axis=0, keepdims=True).astype(jnp.float32)  # (1, cols)
        pmx = jnp.max(x_mx, axis=0, keepdims=True).astype(jnp.float32)
        mn_ref[0] = jnp.broadcast_to(pmn, (_SUB, cols))
        mx_ref[0] = jnp.broadcast_to(pmx, (_SUB, cols))
    return kernel


# ---------------------------------------------------------------------------
# Kernel B2: normalize; per-sample f32 scalars (min, 1/range) from SMEM.
# ---------------------------------------------------------------------------
def _make_apply_kernel():
    def kernel(mn_ref, inv_ref, x_ref, o_ref):
        b = pl.program_id(0)
        xf = x_ref[0].astype(jnp.float32)
        o_ref[0] = ((xf - mn_ref[b]) * inv_ref[b]).astype(o_ref.dtype)
    return kernel


def normalize_layer(x, *, vmem_limit_bytes=None, num_cores=None):
    """Per-sample min-max normalization over all non-batch dims (NCHW etc.)."""
    if x.ndim < 2:
        raise ValueError("normalize_layer expects a batched input (ndim >= 2)")
    orig_shape = x.shape
    orig_dtype = x.dtype
    B = int(orig_shape[0])
    N = int(math.prod(int(s) for s in orig_shape[1:]))

    if vmem_limit_bytes is None:
        vmem_limit_bytes = _default_vmem_limit_bytes()
    if num_cores is None:
        num_cores = _guess_num_tensorcores()
    compiler_limit = max(int(vmem_limit_bytes), 32 * 1024 * 1024)

    # Free reshape (no HBM copy): (B, rows, cols) with rows * cols == N exactly.
    cols = _choose_cols(N, int(orig_shape[-1]))
    rows = N // cols
    x3 = x.reshape(B, rows, cols)

    item = x.dtype.itemsize
    # Conservative VMEM-resident bytes/row: double-buffered in/out blocks plus
    # f32 intermediates created by the in-kernel cast + normalize.
    fused_row_bytes = cols * (4 * item + 8)
    reduce_row_bytes = cols * (2 * item + 4)    # outputs are tiny -> bigger tiles
    apply_row_bytes = cols * (4 * item + 4)

    def _cparams(sem):
        return pltpu.CompilerParams(dimension_semantics=sem,
                                    vmem_limit_bytes=compiler_limit)

    fused_fits = rows * fused_row_bytes <= vmem_limit_bytes
    # B == 1 on a multi-core part: the fused grid=(B,) would feed only one
    # TensorCore; the two-pass path's parallel tile axis uses both.
    force_split = (B == 1 and num_cores >= 2 and rows >= 4 * _SUB)

    if fused_fits and not force_split:
        out3 = pl.pallas_call(
            _make_fused_kernel(),
            out_shape=jax.ShapeDtypeStruct((B, rows, cols), orig_dtype),
            grid=(B,),
            in_specs=[pl.BlockSpec((1, rows, cols), lambda b: (b, 0, 0))],
            out_specs=pl.BlockSpec((1, rows, cols), lambda b: (b, 0, 0)),
            compiler_params=_cparams(("parallel",)),
        )(x3)
        return out3.reshape(orig_shape)

    # ----------------------- two-pass tiled fallback -----------------------
    min_tiles = 2 if force_split else 1

    # Pass 1: per-tile partial min/max (fully parallel).
    max_rows_r = max(_SUB, (vmem_limit_bytes // reduce_row_bytes) // _SUB * _SUB)
    tr_r, nt_r = _pick_tiles(rows, max_rows_r, min_tiles)
    mn_part, mx_part = pl.pallas_call(
        _make_partial_minmax_kernel(rows, tr_r, cols, x.dtype),
        out_shape=(jax.ShapeDtypeStruct((B, nt_r * _SUB, cols), jnp.float32),
                   jax.ShapeDtypeStruct((B, nt_r * _SUB, cols), jnp.float32)),
        grid=(B, nt_r),
        in_specs=[pl.BlockSpec((1, tr_r, cols), lambda b, t: (b, t, 0))],
        out_specs=(pl.BlockSpec((1, _SUB, cols), lambda b, t: (b, t, 0)),
                   pl.BlockSpec((1, _SUB, cols), lambda b, t: (b, t, 0))),
        compiler_params=_cparams(("parallel", "parallel")),
    )(x3)

    # Tiny combine of the partials (a few KiB) + exact scalar reciprocal.
    mn_s = jnp.min(mn_part, axis=(1, 2))                   # (B,) f32
    mx_s = jnp.max(mx_part, axis=(1, 2))                   # (B,) f32
    inv_s = 1.0 / (mx_s - mn_s + _EPS)                     # exact divide, once per sample

    # Pass 2: normalize (fully parallel); scalars read from SMEM.
    max_rows_a = max(_SUB, (vmem_limit_bytes // apply_row_bytes) // _SUB * _SUB)
    tr_a, nt_a = _pick_tiles(rows, max_rows_a, min_tiles)
    out3 = pl.pallas_call(
        _make_apply_kernel(),
        out_shape=jax.ShapeDtypeStruct((B, rows, cols), orig_dtype),
        grid=(B, nt_a),
        in_specs=[
            pl.BlockSpec(memory_space=pltpu.MemorySpace.SMEM),
            pl.BlockSpec(memory_space=pltpu.MemorySpace.SMEM),
            pl.BlockSpec((1, tr_a, cols), lambda b, t: (b, t, 0)),
        ],
        out_specs=pl.BlockSpec((1, tr_a, cols), lambda b, t: (b, t, 0)),
        compiler_params=_cparams(("parallel", "parallel")),
    )(mn_s, inv_s, x3)
    return out3.reshape(orig_shape)


# ---------------------------------------------------------------------------
# Pure-JAX reference for verification
# ---------------------------------------------------------------------------
def normalize_reference(x):
    axes = tuple(range(1, x.ndim))
    xf = x.astype(jnp.float32)
    mn = jnp.min(xf, axis=axes, keepdims=True)
    mx = jnp.max(xf, axis=axes, keepdims=True)
    return ((xf - mn) / (mx - mn + _EPS)).astype(x.dtype)


if __name__ == "__main__":
    key = jax.random.PRNGKey(0)
    k0, k1, k2, k3 = jax.random.split(key, 4)

    # 1) Small NCHW input -> fused single-pass path.
    x1 = jax.random.normal(k0, (2, 4, 16, 16), jnp.float32)
    o1 = jax.block_until_ready(normalize_layer(x1))
    r1 = jax.block_until_ready(normalize_reference(x1))
    assert o1.shape == x1.shape and o1.dtype == x1.dtype
    assert np.allclose(np.asarray(o1), np.asarray(r1), atol=1e-5, rtol=1e-5), (
        float(np.max(np.abs(np.asarray(o1) - np.asarray(r1)))))

    # 2) Awkward non-multiple-of-128 shape with a tiny budget -> tiled two-pass
    #    fallback with ragged (masked) last tiles.
    x2 = jax.random.normal(k1, (2, 3, 33, 47), jnp.float32)
    o2 = jax.block_until_ready(normalize_layer(x2, vmem_limit_bytes=32 * 1024))
    r2 = jax.block_until_ready(normalize_reference(x2))
    assert o2.shape == x2.shape
    assert np.allclose(np.asarray(o2), np.asarray(r2), atol=1e-5, rtol=1e-5), (
        float(np.max(np.abs(np.asarray(o2) - np.asarray(r2)))))

    # 3) B == 1 with a simulated 2-TensorCore part -> forced two-pass split so
    #    both cores get "parallel" tiles.
    x3 = jax.random.normal(k2, (1, 4, 32, 32), jnp.float32)
    o3 = jax.block_until_ready(normalize_layer(x3, num_cores=2))
    r3 = jax.block_until_ready(normalize_reference(x3))
    assert np.allclose(np.asarray(o3), np.asarray(r3), atol=1e-5, rtol=1e-5), (
        float(np.max(np.abs(np.asarray(o3) - np.asarray(r3)))))

    # 4) bf16 stays bf16 end-to-end (no wrapper-side dtype passes through HBM).
    x4 = jax.random.normal(k3, (2, 4, 16, 16), jnp.float32).astype(jnp.bfloat16)
    o4 = jax.block_until_ready(normalize_layer(x4))
    r4 = jax.block_until_ready(normalize_reference(x4))
    assert o4.dtype == jnp.bfloat16
    assert np.allclose(np.asarray(o4, dtype=np.float32),
                       np.asarray(r4, dtype=np.float32), atol=2e-2, rtol=2e-2)

    print("KERNEL_OK")
</pallas_src>

<mosaic_0001>
module attributes {stable_mosaic.version = 11 : i64} {
  func.func @kernel(%arg0: i32, %arg1: memref<1x8x128xf32, #tpu.memory_space<vmem>>, %arg2: memref<1x8x128xf32, #tpu.memory_space<vmem>>) attributes {dimension_semantics = [#tpu.dimension_semantics<parallel>], iteration_bounds = array<i64: 2>, scalar_prefetch = 0 : i64, scratch_operands = 0 : i64, tpu.core_type = #tpu.core_type<tc>, window_params = [{transform_indices = @transform_0, window_bounds = array<i64: 1, 8, 128>}, {transform_indices = @transform_1, window_bounds = array<i64: 1, 8, 128>}]} {
    %c0 = arith.constant 0 : index
    %c0_0 = arith.constant 0 : index
    %c0_1 = arith.constant 0 : index
    %0 = vector.load %arg1[%c0, %c0_0, %c0_1] : memref<1x8x128xf32, #tpu.memory_space<vmem>>, vector<1x8x128xf32>
    %1 = vector.shape_cast %0 : vector<1x8x128xf32> to vector<8x128xf32>
    %cst = arith.constant dense<0x7F800000> : vector<128xf32>
    %2 = vector.multi_reduction <minimumf>, %1, %cst [0] : vector<8x128xf32> to vector<128xf32>
    %3 = vector.shape_cast %2 : vector<128xf32> to vector<1x128xf32>
    %cst_2 = arith.constant dense<0xFF800000> : vector<128xf32>
    %4 = vector.multi_reduction <maximumf>, %1, %cst_2 [0] : vector<8x128xf32> to vector<128xf32>
    %5 = vector.shape_cast %4 : vector<128xf32> to vector<1x128xf32>
    %cst_3 = arith.constant dense<0x7F800000> : vector<1xf32>
    %6 = vector.multi_reduction <minimumf>, %3, %cst_3 [1] : vector<1x128xf32> to vector<1xf32>
    %7 = vector.shape_cast %6 : vector<1xf32> to vector<1x1xf32>
    %cst_4 = arith.constant dense<0xFF800000> : vector<1xf32>
    %8 = vector.multi_reduction <maximumf>, %5, %cst_4 [1] : vector<1x128xf32> to vector<1xf32>
    %9 = vector.shape_cast %8 : vector<1xf32> to vector<1x1xf32>
    %10 = arith.subf %9, %7 : vector<1x1xf32>
    %cst_5 = arith.constant 9.99999997E-7 : f32
    %11 = vector.broadcast %cst_5 : f32 to vector<1x1xf32>
    %12 = arith.addf %10, %11 : vector<1x1xf32>
    %cst_6 = arith.constant 1.000000e+00 : f32
    %13 = vector.broadcast %cst_6 : f32 to vector<1x1xf32>
    %14 = arith.divf %13, %12 : vector<1x1xf32>
    %15 = vector.broadcast %7 : vector<1x1xf32> to vector<8x128xf32>
    %16 = arith.subf %1, %15 : vector<8x128xf32>
    %17 = vector.broadcast %14 : vector<1x1xf32> to vector<8x128xf32>
    %18 = arith.mulf %16, %17 : vector<8x128xf32>
    %c0_7 = arith.constant 0 : index
    %c0_8 = arith.constant 0 : index
    %c0_9 = arith.constant 0 : index
    %19 = vector.load %arg2[%c0_7, %c0_8, %c0_9] : memref<1x8x128xf32, #tpu.memory_space<vmem>>, vector<1x8x128xf32>
    %20 = vector.shape_cast %19 : vector<1x8x128xf32> to vector<8x128xf32>
    %21 = vector.shape_cast %18 : vector<8x128xf32> to vector<1x8x128xf32>
    tpu.vector_store %arg2[%c0_7, %c0_8, %c0_9], %21 {strides = array<i32>} : memref<1x8x128xf32, #tpu.memory_space<vmem>>, vector<1x8x128xf32>,
    return
  }
  func.func @transform_0(%arg0: i32) -> (i32, i32, i32) {
    %c0_i32 = arith.constant 0 : i32
    %c0_i32_0 = arith.constant 0 : i32
    %c0_i32_1 = arith.constant 0 : i32
    return %arg0, %c0_i32, %c0_i32_0 : i32, i32, i32
  }
  func.func @transform_1(%arg0: i32) -> (i32, i32, i32) {
    %c0_i32 = arith.constant 0 : i32
    %c0_i32_0 = arith.constant 0 : i32
    %c0_i32_1 = arith.constant 0 : i32
    return %arg0, %c0_i32, %c0_i32_0 : i32, i32, i32
  }
}

</mosaic_0001>

<llo_original>
// kernel: tpu_custom_call.1
$region0: #{tpu_custom_call.1}
  #allocation0 [shape = 'u32[]', space=smem, size = 0x4, offset = 0x4, fixed_abs, tag = 'smem constant byte address 0x4 - core index']
  #allocation1 [shape = 'u32[144,128]{1,0:T(1,128)}', space=vmem, size = 0x12000, scoped, tag = 'internal scratch']
  %s0 = inlined_call_operand.hbm [shape: f32[2,8,128], index: 0, kind: input, shape index: {}]
  %s1 = inlined_call_operand.hbm [shape: f32[2,8,128], index: 1, kind: output, shape index: {}]
  %s2 = sld [smem:[#allocation0]]
  $region41: #{tpu_custom_call.1} parent=0
    _
  %s4 = ssub.s32 1, %s2
  %s5 = scalar_select 0, %s4, %s2
  $region1: #{tpu_custom_call.1} parent=0
    #allocation2 [shape = 'u8[8192]{0}', space=vmem, size = 0x2000, scoped, tag = 'input window, operand 0']
    #allocation3 [shape = 's32[2]{0}', space=sflag, size = 0x8, scoped, tag = 'scoped memory for tpu_custom_call.1']
    #allocation4 [shape = 's32[2]{0}', space=sflag, size = 0x8, scoped, tag = 'scoped memory for tpu_custom_call.1']
    #allocation5 [shape = 'u8[8192]{0}', space=vmem, size = 0x2000, scoped, tag = 'output window, operand 0']
    %6 = vsyncpa [#allocation3], 0
    %s7 = scalar_lea.sflag [#allocation3], 1
    %8 = vsyncpa %s7, 0
    %9 = vsyncpa [#allocation4], 0
    %s10 = scalar_lea.sflag [#allocation4], 1
    %11 = vsyncpa %s10, 0
    loop: start=0, step=1, limit=4
    $region2: #{tpu_custom_call.1} parent=1 // loop_pre_header
      _
    $region3: #{tpu_custom_call.1} parent=1 // loop_header
      %s13 = sphi 0, %s17
      %p14 = scmp.ge.s32.totalorder %s13, 4
      %s23 = sphi 0, %s25
      %s26 = sphi 0, %s23
      %s27 = sphi 0, %s26
      %s43 = sphi 0, %s27
      %s49 = sphi 0, %s51
      %s52 = sphi 0, %s49
      %s53 = sphi 0, %s52
      %s69 = sphi 0, %s53
    $region4: #{tpu_custom_call.1} parent=1 // loop_header_branch
      %16 = sbr.rel (%p14) target = $region8
    $region5: #{tpu_custom_call.1} parent=1 // loop_body
      %s18 = ssub.s32 %s13, 1
      %s19 = ssub.s32 %s13, 2
      %s20 = sadd.s32 %s13, 1
      %s21 = ssub.s32 %s13, %s20
      %p22 = scmp.eq.s32.totalorder %s21, 0
      %s24 = sadd.s32 %s23, 1
      %s25 = scalar_select %p22, %s23, %s24
      %p28 = pneg %p22
      %p29 = scmp.eq.s32.totalorder %s13, 1
      %p30 = por %p28, %p29
      %p31 = scmp.ne.s32.totalorder %s23, %s26
      %p32 = scmp.eq.s32.totalorder %s13, 0
      %p33 = por %p31, %p32
      %p34 = scmp.ne.s32.totalorder %s23, %s26
      %p35 = scmp.eq.s32.totalorder %s18, 1
      %p36 = por %p34, %p35
      %p37 = scmp.ne.s32.totalorder %s26, %s27
      %p38 = scmp.eq.s32.totalorder %s18, 0
      %p39 = por %p37, %p38
      %p40 = scmp.ne.s32.totalorder %s26, %s27
      %p41 = scmp.eq.s32.totalorder %s19, 1
      %p42 = por %p40, %p41
      %p44 = scmp.ne.s32.totalorder %s27, %s43
      %p45 = scmp.eq.s32.totalorder %s19, 0
      %p46 = por %p44, %p45
      %s47 = ssub.s32 %s13, %s20
      %p48 = scmp.eq.s32.totalorder %s47, 0
      %s50 = sadd.s32 %s49, 1
      %s51 = scalar_select %p48, %s49, %s50
      %p54 = pneg %p48
      %p55 = scmp.eq.s32.totalorder %s13, 1
      %p56 = por %p54, %p55
      %p57 = scmp.ne.s32.totalorder %s49, %s52
      %p58 = scmp.eq.s32.totalorder %s13, 0
      %p59 = por %p57, %p58
      %p60 = scmp.ne.s32.totalorder %s49, %s52
      %p61 = scmp.eq.s32.totalorder %s18, 1
      %p62 = por %p60, %p61
      %p63 = scmp.ne.s32.totalorder %s52, %s53
      %p64 = scmp.eq.s32.totalorder %s18, 0
      %p65 = por %p63, %p64
      %p66 = scmp.ne.s32.totalorder %s52, %s53
      %p67 = scmp.eq.s32.totalorder %s19, 1
      %p68 = por %p66, %p67
      %p70 = scmp.ne.s32.totalorder %s53, %s69
      %p71 = scmp.eq.s32.totalorder %s19, 0
      %p72 = por %p70, %p71
      %p73 = scmp.le.s32.totalorder 1, %s13
      %p74 = scmp.lt.s32.totalorder %s13, 3
      %p75 = pnand %p73, %p74
      %p76 = pneg %p75
      // Predicated region
      $region9: #{tpu_custom_call.1} parent=5 // pred_check
        _
      $region10: #{tpu_custom_call.1} parent=5 // pred_check_branch
        %78 = sbr.rel (%p75) target = $region12
      $region11: #{tpu_custom_call.1} parent=5 // pred_region
        %s79 = ssub.s32 %s13, 1
      $region12: #{tpu_custom_call.1} parent=5 // pred_fallthru
        _
      %p80 = scmp.lt.s32.totalorder %s13, 2
      // Predicated region
      $region13: #{tpu_custom_call.1} parent=5 // pred_check
        %p81 = pneg %p80
      $region14: #{tpu_custom_call.1} parent=5 // pred_check_branch
        %83 = sbr.rel (%p81) target = $region16
      $region15: #{tpu_custom_call.1} parent=5 // pred_region
        // Predicated region
        $region17: #{tpu_custom_call.1} parent=15 // pred_check
          %p84 = pneg %p33
        $region18: #{tpu_custom_call.1} parent=15 // pred_check_branch
          %86 = sbr.rel (%p84) target = $region20
        $region19: #{tpu_custom_call.1} parent=15 // pred_region
          %s87 = sand.u32 %s23, 1
          %s88 = scalar_lea.sflag [#allocation3], %s87
          %s89 = sand.u32 %s23, 1
          %s90 = smul.addr %s89, 8
          %s91 = scalar_lea.vmem [#allocation2], %s90
          %s93 = ssub.s32 128, 128
          %94 = vsyncadd %s88, %s93
          %s95 = smul.addr %s13, 128
          %s96 = scalar_lea.hbm %s0, %s95
          %s98 = sshll.u32 %s91, 4
          %s99 = int_to_ptr.vmem [resolvable:$true] %s98
          %101 = dma.hbm_to_vmem [thread:$0]  %s96, 128, %s99, %s88
        $region20: #{tpu_custom_call.1} parent=15 // pred_fallthru
          _
      $region16: #{tpu_custom_call.1} parent=5 // pred_fallthru
        _
      %p102 = scmp.le.s32.totalorder 1, %s13
      %p103 = scmp.lt.s32.totalorder %s13, 3
      %p104 = pnand %p102, %p103
      %p105 = pneg %p104
      // Predicated region
      $region21: #{tpu_custom_call.1} parent=5 // pred_check
        _
      $region22: #{tpu_custom_call.1} parent=5 // pred_check_branch
        %107 = sbr.rel (%p104) target = $region24
      $region23: #{tpu_custom_call.1} parent=5 // pred_region
        %s108 = ssub.s32 %s13, 1
        %s109 = sand.u32 %s26, 1
        %s110 = scalar_lea.sflag [#allocation3], %s109
        %s111 = sand.u32 %s26, 1
        %s112 = smul.addr %s111, 8
        %s113 = scalar_lea.vmem [#allocation2], %s112
        // Predicated region
        $region25: #{tpu_custom_call.1} parent=23 // pred_check
          %p114 = pneg %p39
        $region26: #{tpu_custom_call.1} parent=23 // pred_check_branch
          %116 = sbr.rel (%p114) target = $region28
        $region27: #{tpu_custom_call.1} parent=23 // pred_region
          %117 = dma.done %s110, 128
        $region28: #{tpu_custom_call.1} parent=23 // pred_fallthru
          _
        %s118 = sand.u32 %s26, 1
        %s119 = scalar_lea.sflag [#allocation3], %s118
        %s120 = sand.u32 %s26, 1
        %s121 = smul.addr %s120, 8
        %s122 = scalar_lea.vmem [#allocation2], %s121
        %p123 = pneg %p39
        %p124 = pneg %p36
        %p125 = pneg %p65
        %p126 = pneg %p62
        %s127 = sand.u32 %s52, 1
        %s128 = scalar_lea.sflag [#allocation4], %s127
        %s129 = sand.u32 %s52, 1
        %s130 = smul.addr %s129, 8
        %s131 = scalar_lea.vmem [#allocation5], %s130
        %v132 = vld [vmem:[%s113] sm:$0xff]
        %v133 = vrot.slane %v132, 4
        %v134 = vmin.f32 %v132, %v133
        %v135 = vrot.slane %v134, 2
        %v136 = vmin.f32 %v134, %v135
        %v137 = vrot.slane %v136, 1
        %v138 = vmin.f32 %v136, %v137
        %v139 = vrot.slane %v132, 4
        %v140 = vmax.f32 %v132, %v139
        %v141 = vrot.slane %v140, 2
        %v142 = vmax.f32 %v140, %v141
        %v143 = vrot.slane %v142, 1
        %v144 = vmax.f32 %v142, %v143
        %145 = vmin.xlane.f32.xlu0 %v138
        %v146 = vpop.xlane.xlu0 %145
        %147 = vmax.xlane.f32.xlu0 %v144
        %v148 = vpop.xlane.xlu0 %147
        %v149 = vsub.f32 %v148, %v146
        %v150 = vadd.f32 %v149, 1e-06
        %v151 = vrcp.pop %v150
        %v152 = vmul.f32 1.0, %v151
        %v153 = vsub.f32 %v132, %v146
        %v154 = vmul.f32 %v153, %v152
        %155 = vst [vmem:[%s131] sm:$0xff] %v154
        %s156 = sand.u32 %s52, 1
        %s157 = scalar_lea.sflag [#allocation4], %s156
        %s158 = sand.u32 %s52, 1
        %s159 = smul.addr %s158, 8
        %s160 = scalar_lea.vmem [#allocation5], %s159
        // Predicated region
        $region29: #{tpu_custom_call.1} parent=23 // pred_check
          %p161 = pneg %p62
        $region30: #{tpu_custom_call.1} parent=23 // pred_check_branch
          %163 = sbr.rel (%p161) target = $region32
        $region31: #{tpu_custom_call.1} parent=23 // pred_region
          %s165 = ssub.s32 128, 128
          %166 = vsyncadd %s157, %s165
          %s167 = smul.addr %s18, 128
          %s168 = scalar_lea.hbm %s1, %s167
          %s170 = sshll.u32 %s160, 4
          %s171 = int_to_ptr.vmem [resolvable:$true] %s170
          %173 = dma.vmem_to_hbm [thread:$0]  %s171, 128, %s168, %s157
        $region32: #{tpu_custom_call.1} parent=23 // pred_fallthru
          _
      $region24: #{tpu_custom_call.1} parent=5 // pred_fallthru
        _
      %p174 = scmp.le.s32.totalorder 2, %s13
      // Predicated region
      $region33: #{tpu_custom_call.1} parent=5 // pred_check
        %p175 = pneg %p174
      $region34: #{tpu_custom_call.1} parent=5 // pred_check_branch
        %177 = sbr.rel (%p175) target = $region36
      $region35: #{tpu_custom_call.1} parent=5 // pred_region
        %s178 = ssub.s32 %s13, 2
        // Predicated region
        $region37: #{tpu_custom_call.1} parent=35 // pred_check
          %p179 = pneg %p68
        $region38: #{tpu_custom_call.1} parent=35 // pred_check_branch
          %181 = sbr.rel (%p179) target = $region40
        $region39: #{tpu_custom_call.1} parent=35 // pred_region
          %s182 = sand.u32 %s53, 1
          %s183 = scalar_lea.sflag [#allocation4], %s182
          %s184 = sand.u32 %s53, 1
          %s185 = smul.addr %s184, 8
          %s186 = scalar_lea.vmem [#allocation5], %s185
          %187 = dma.done %s183, 128
        $region40: #{tpu_custom_call.1} parent=35 // pred_fallthru
          _
      $region36: #{tpu_custom_call.1} parent=5 // pred_fallthru
        _
    $region6: #{tpu_custom_call.1} parent=1 // loop_footer
      %s17 = sadd.s32 1, %s13
    $region7: #{tpu_custom_call.1} parent=1 // loop_footer_branch
      %12 = sbr.rel target = $region3
    $region8: #{tpu_custom_call.1} parent=1 // loop_exit
      _
    %188 = vsyncpa [#allocation3], 1
    %s189 = scalar_lea.sflag [#allocation3], 1
    %190 = vsyncpa %s189, 1
    %191 = vsyncpa [#allocation4], 1
    %s192 = scalar_lea.sflag [#allocation4], 1
    %193 = vsyncpa %s192, 1

</llo_original>
